<compile_context>
chip_gen: v7x
topology: tpu7x:2x2x1
jax: 0.10.0
libtpu: 0.0.40
codegen_flags: <defaults>
</compile_context>

<pallas_src>
import functools

import jax
import jax.numpy as jnp
from jax.experimental import pallas as pl
from jax.experimental.pallas import tpu as pltpu


def mha_kernel(x_ref, mask_ref, wq_ref, wk_ref, wv_ref, wo_ref, o_ref, slab_ref, *, heads):
    """One grid step == one block of B_BLK batch elements, fully resident in VMEM."""
    b_blk, n, dim = x_ref.shape
    d = dim // heads
    m = b_blk * n

    # Flatten (batch block, seq) -> rows so the projections get an MXU-sized M dimension.
    x2 = x_ref[...].reshape(m, dim)                                   # bf16, (M, dim)

    # Projections: bf16 MXU matmuls with f32 accumulation (PyTorch Linear: y = x @ W^T,
    # weights arrive pre-transposed; the 1/sqrt(d) scale is already folded into Wq^T).
    q = jnp.dot(x2, wq_ref[...], preferred_element_type=jnp.float32)
    k = jnp.dot(x2, wk_ref[...], preferred_element_type=jnp.float32)
    v = jnp.dot(x2, wv_ref[...], preferred_element_type=jnp.float32)
    qb = q.astype(jnp.bfloat16)
    kb = k.astype(jnp.bfloat16)
    vb = v.astype(jnp.bfloat16)

    # Key-padding additive bias, hoisted out of the head loop: (b_blk, 1, n) broadcasts over
    # queries.  0 where mask == 1, -1e6 otherwise (matches PyTorch for any row with >=1 key).
    bias = jnp.where(mask_ref[...] != 0, 0.0, -1000000.0).astype(jnp.float32)

    # Static unroll over heads (small head counts); see TODO(synk) above for large `heads`.
    for h in range(heads):
        lo, hi = h * d, (h + 1) * d
        qh = qb[:, lo:hi].reshape(b_blk, n, d)                        # (b, n, d)
        kh = kb[:, lo:hi].reshape(b_blk, n, d)
        vh = vb[:, lo:hi].reshape(b_blk, n, d)

        # Scores batched over the batch block: (b, n_q, n_k), f32 accumulation.
        s = jnp.einsum('bqd,bkd->bqk', qh, kh, preferred_element_type=jnp.float32)
        s = s + bias                                                  # broadcast add, no select

        # Softmax over the key axis, in f32; reciprocal goes to the EUP slot.
        s = s - jnp.max(s, axis=-1, keepdims=True)
        e = jnp.exp(s)
        p = e * pl.reciprocal(jnp.sum(e, axis=-1, keepdims=True), approx=True)

        oh = jnp.einsum('bqk,bkd->bqd', p.astype(jnp.bfloat16), vh,
                        preferred_element_type=jnp.float32)           # (b, n, d)

        # Stash this head's output in the bf16 slab at lane offset h*d (masked vst, hides
        # under the MXU); the output projection runs once after the loop with K=dim.
        slab_ref[:, lo:hi] = oh.reshape(m, d).astype(jnp.bfloat16)

    # Single full-depth output projection + one lane-dense store of the whole block.
    out = jnp.dot(slab_ref[...], wo_ref[...], preferred_element_type=jnp.float32)
    o_ref[...] = out.reshape(b_blk, n, dim).astype(o_ref.dtype)


def _vmem_policy():
    """Chip-aware scoped-VMEM limit and block-sizing budget."""
    try:
        cap = int(pltpu.get_tpu_info().vmem_capacity_bytes)
    except Exception:
        cap = 64 * 1024 * 1024                       # conservative fallback (v7x-sized)
    if cap <= 80 * 1024 * 1024:                      # v7x: 64 MiB per TensorCore
        limit = 40 * 1024 * 1024
    else:                                            # v5e / v6e: 128 MiB
        limit = 96 * 1024 * 1024
    budget = (limit * 3) // 4                        # headroom for compiler internal scratch
    return limit, budget


def _pick_batch_block(bs, n, dim, *, vmem_budget_bytes, out_bytes=4, min_grid=2, max_rows=4096):
    """Largest divisor of bs whose per-step working set fits the VMEM budget, while keeping
    at least `min_grid` grid steps so both v7x TensorCores get work."""
    weights = 2 * 4 * dim * dim * 2                  # four bf16 weights, double-buffered
    per_b = (2 * n * dim * 2                         # x block (bf16), double-buffered
             + 2 * n * dim * out_bytes               # out block, double-buffered
             + 3 * n * dim * 2                       # bf16 q / k / v
             + n * dim * 2                           # bf16 head-output slab (scratch)
             + n * dim * 4                           # transient f32 projection / Wo result
             + 3 * n * n * 4)                        # f32 score / exp / prob tiles (one head)
    cap = max(1, (vmem_budget_bytes - weights) // per_b)
    max_blk = max(1, bs // max(1, min_grid))
    b_blk = 1
    for cand in range(1, bs + 1):
        if bs % cand == 0 and cand <= cap and cand <= max_blk and cand * n <= max_rows:
            b_blk = cand
    return b_blk


def multi_head_attention(x, mask, w_q, w_k, w_v, w_o, heads, b_blk=None, out_dtype=None):
    """x: (bs, n, dim) f32, mask: (bs, n) (1.0 = keep), weights: (dim, dim) PyTorch layout.
    out_dtype=jnp.bfloat16 halves HBM writeback if the consumer allows; default matches x."""
    bs, n, dim = x.shape
    assert dim % heads == 0
    d = dim // heads
    inv_scale = 1.0 / float(d ** 0.5)
    out_dtype = x.dtype if out_dtype is None else out_dtype

    vmem_limit, vmem_budget = _vmem_policy()
    if b_blk is None:
        b_blk = _pick_batch_block(bs, n, dim, vmem_budget_bytes=vmem_budget,
                                  out_bytes=jnp.dtype(out_dtype).itemsize, min_grid=2)
    assert bs % b_blk == 0
    grid_b = bs // b_blk

    # bf16 matmul inputs (f32 accumulation inside the kernel).
    x_bf = x.astype(jnp.bfloat16)
    # PyTorch semantics: keep where mask == 1 (exact compare in f32 here, passed as int mask).
    keep = (mask == 1).astype(jnp.int32).reshape(bs, 1, n)
    # Pre-transpose Linear weights so the kernel does plain x @ Wt; fold the 1/sqrt(d) query
    # scale into Wq^T (one-time host cost, removes an (M, dim) VPU multiply per grid step).
    wq_t = (jnp.asarray(w_q, jnp.float32).T * inv_scale).astype(jnp.bfloat16)
    wk_t = jnp.asarray(w_k, jnp.float32).T.astype(jnp.bfloat16)
    wv_t = jnp.asarray(w_v, jnp.float32).T.astype(jnp.bfloat16)
    wo_t = jnp.asarray(w_o, jnp.float32).T.astype(jnp.bfloat16)

    kernel = functools.partial(mha_kernel, heads=heads)

    return pl.pallas_call(
        kernel,
        out_shape=jax.ShapeDtypeStruct((bs, n, dim), out_dtype),
        grid_spec=pltpu.PrefetchScalarGridSpec(
            num_scalar_prefetch=0,
            grid=(grid_b,),
            in_specs=[
                pl.BlockSpec((b_blk, n, dim), lambda b: (b, 0, 0)),   # x  (bf16)
                pl.BlockSpec((b_blk, 1, n), lambda b: (b, 0, 0)),     # keep mask (int32)
                pl.BlockSpec((dim, dim), lambda b: (0, 0)),           # Wq^T * 1/sqrt(d) (resident)
                pl.BlockSpec((dim, dim), lambda b: (0, 0)),           # Wk^T
                pl.BlockSpec((dim, dim), lambda b: (0, 0)),           # Wv^T
                pl.BlockSpec((dim, dim), lambda b: (0, 0)),           # Wo^T
            ],
            out_specs=pl.BlockSpec((b_blk, n, dim), lambda b: (b, 0, 0)),
            scratch_shapes=[pltpu.VMEM((b_blk * n, dim), jnp.bfloat16)],  # per-head output slab
        ),
        compiler_params=pltpu.CompilerParams(
            dimension_semantics=("parallel",),
            vmem_limit_bytes=vmem_limit,
        ),
    )(x_bf, keep, wq_t, wk_t, wv_t, wo_t)


def mha_reference(x, mask, w_q, w_k, w_v, w_o, heads):
    """Pure-JAX reference mirroring the PyTorch forward (dropout = identity) with the same
    bf16-matmul / f32-accumulation numerics as the kernel."""
    bs, n, dim = x.shape
    d = dim // heads
    scale = float(d) ** 0.5
    xb = x.astype(jnp.bfloat16)
    wq, wk, wv, wo = (jnp.asarray(w, jnp.float32).T.astype(jnp.bfloat16)
                      for w in (w_q, w_k, w_v, w_o))
    q = jnp.dot(xb, wq, preferred_element_type=jnp.float32)
    k = jnp.dot(xb, wk, preferred_element_type=jnp.float32)
    v = jnp.dot(xb, wv, preferred_element_type=jnp.float32)
    q = q.reshape(bs, n, heads, d).transpose(0, 2, 1, 3)
    k = k.reshape(bs, n, heads, d).transpose(0, 2, 1, 3)
    v = v.reshape(bs, n, heads, d).transpose(0, 2, 1, 3)
    s = jnp.einsum('bhqd,bhkd->bhqk', q.astype(jnp.bfloat16), k.astype(jnp.bfloat16),
                   preferred_element_type=jnp.float32) / scale
    keep = (mask == 1)[:, None, None, :]
    s = jnp.where(keep, s, -1000000.0)
    p = jax.nn.softmax(s, axis=-1)
    out = jnp.einsum('bhqk,bhkd->bhqd', p.astype(jnp.bfloat16), v.astype(jnp.bfloat16),
                     preferred_element_type=jnp.float32)
    out = out.transpose(0, 2, 1, 3).reshape(bs, n, dim)
    return jnp.dot(out.astype(jnp.bfloat16), wo, preferred_element_type=jnp.float32)


if __name__ == "__main__":
    bs, n, dim, heads = 2, 8, 32, 4

    key = jax.random.PRNGKey(0)
    kx, kq, kk, kv, ko = jax.random.split(key, 5)

    x = jax.random.normal(kx, (bs, n, dim), dtype=jnp.float32)

    # PyTorch nn.Linear default init: U(-1/sqrt(in), 1/sqrt(in)); layout (out, in).
    bound = 1.0 / (dim ** 0.5)
    w_q = jax.random.uniform(kq, (dim, dim), jnp.float32, -bound, bound)
    w_k = jax.random.uniform(kk, (dim, dim), jnp.float32, -bound, bound)
    w_v = jax.random.uniform(kv, (dim, dim), jnp.float32, -bound, bound)
    w_o = jax.random.uniform(ko, (dim, dim), jnp.float32, -bound, bound)

    # mask: 1.0 = attend, 0.0 = masked (pad); make the last two tokens of batch 1 padded.
    mask = jnp.ones((bs, n), dtype=jnp.float32)
    mask = mask.at[1, -2:].set(0.0)

    out = multi_head_attention(x, mask, w_q, w_k, w_v, w_o, heads)
    out = jax.block_until_ready(out)

    ref = mha_reference(x, mask, w_q, w_k, w_v, w_o, heads)
    assert out.shape == (bs, n, dim)
    assert jnp.allclose(out, ref, atol=2e-2, rtol=2e-2), "mismatch vs reference"

    print("KERNEL_OK")
</pallas_src>

<mosaic_0001>
module attributes {stable_mosaic.version = 11 : i64} {
  func.func @mha_kernel(%arg0: i32, %arg1: memref<1x8x32xbf16, #tpu.memory_space<vmem>>, %arg2: memref<1x1x8xi32, #tpu.memory_space<vmem>>, %arg3: memref<32x32xbf16, #tpu.memory_space<vmem>>, %arg4: memref<32x32xbf16, #tpu.memory_space<vmem>>, %arg5: memref<32x32xbf16, #tpu.memory_space<vmem>>, %arg6: memref<32x32xbf16, #tpu.memory_space<vmem>>, %arg7: memref<1x8x32xf32, #tpu.memory_space<vmem>>, %arg8: memref<8x32xbf16, #tpu.memory_space<vmem>>) attributes {dimension_semantics = [#tpu.dimension_semantics<parallel>], iteration_bounds = array<i64: 2>, scalar_prefetch = 0 : i64, scratch_operands = 1 : i64, tpu.core_type = #tpu.core_type<tc>, window_params = [{transform_indices = @transform_0, window_bounds = array<i64: 1, 8, 32>}, {transform_indices = @transform_1, window_bounds = array<i64: 1, 1, 8>}, {pipeline_mode = #tpu.pipeline_mode<synchronous>, transform_indices = @transform_2, window_bounds = array<i64: 32, 32>}, {pipeline_mode = #tpu.pipeline_mode<synchronous>, transform_indices = @transform_3, window_bounds = array<i64: 32, 32>}, {pipeline_mode = #tpu.pipeline_mode<synchronous>, transform_indices = @transform_4, window_bounds = array<i64: 32, 32>}, {pipeline_mode = #tpu.pipeline_mode<synchronous>, transform_indices = @transform_5, window_bounds = array<i64: 32, 32>}, {transform_indices = @transform_6, window_bounds = array<i64: 1, 8, 32>}]} {
    %c0 = arith.constant 0 : index
    %c0_0 = arith.constant 0 : index
    %c0_1 = arith.constant 0 : index
    %0 = vector.load %arg1[%c0, %c0_0, %c0_1] : memref<1x8x32xbf16, #tpu.memory_space<vmem>>, vector<1x8x32xbf16>
    %1 = vector.shape_cast %0 : vector<1x8x32xbf16> to vector<8x32xbf16>
    %c0_2 = arith.constant 0 : index
    %c0_3 = arith.constant 0 : index
    %2 = vector.load %arg3[%c0_2, %c0_3] : memref<32x32xbf16, #tpu.memory_space<vmem>>, vector<32x32xbf16>
    %cst = arith.constant dense<0.000000e+00> : vector<8x32xf32>
    %3 = tpu.matmul %1, %2, %cst {dimension_numbers = #tpu.dot_dimension_numbers<[1], [0], [0], [1], [0, 0, 1, 1], [], []>} : vector<8x32xbf16>, vector<32x32xbf16>, vector<8x32xf32> -> vector<8x32xf32>
    %c0_4 = arith.constant 0 : index
    %c0_5 = arith.constant 0 : index
    %4 = vector.load %arg4[%c0_4, %c0_5] : memref<32x32xbf16, #tpu.memory_space<vmem>>, vector<32x32xbf16>
    %cst_6 = arith.constant dense<0.000000e+00> : vector<8x32xf32>
    %5 = tpu.matmul %1, %4, %cst_6 {dimension_numbers = #tpu.dot_dimension_numbers<[1], [0], [0], [1], [0, 0, 1, 1], [], []>} : vector<8x32xbf16>, vector<32x32xbf16>, vector<8x32xf32> -> vector<8x32xf32>
    %c0_7 = arith.constant 0 : index
    %c0_8 = arith.constant 0 : index
    %6 = vector.load %arg5[%c0_7, %c0_8] : memref<32x32xbf16, #tpu.memory_space<vmem>>, vector<32x32xbf16>
    %cst_9 = arith.constant dense<0.000000e+00> : vector<8x32xf32>
    %7 = tpu.matmul %1, %6, %cst_9 {dimension_numbers = #tpu.dot_dimension_numbers<[1], [0], [0], [1], [0, 0, 1, 1], [], []>} : vector<8x32xbf16>, vector<32x32xbf16>, vector<8x32xf32> -> vector<8x32xf32>
    %8 = arith.truncf %3 : vector<8x32xf32> to vector<8x32xbf16>
    %9 = arith.truncf %5 : vector<8x32xf32> to vector<8x32xbf16>
    %10 = arith.truncf %7 : vector<8x32xf32> to vector<8x32xbf16>
    %c0_10 = arith.constant 0 : index
    %c0_11 = arith.constant 0 : index
    %c0_12 = arith.constant 0 : index
    %11 = vector.load %arg2[%c0_10, %c0_11, %c0_12] : memref<1x1x8xi32, #tpu.memory_space<vmem>>, vector<1x1x8xi32>
    %c0_i32 = arith.constant 0 : i32
    %12 = vector.broadcast %c0_i32 : i32 to vector<1x1x8xi32>
    %13 = arith.cmpi ne, %11, %12 : vector<1x1x8xi32>
    %cst_13 = arith.constant 0.000000e+00 : f32
    %cst_14 = arith.constant -1.000000e+06 : f32
    %14 = vector.broadcast %cst_13 : f32 to vector<1x1x8xf32>
    %15 = vector.broadcast %cst_14 : f32 to vector<1x1x8xf32>
    %16 = arith.select %13, %14, %15 : vector<1x1x8xi1>, vector<1x1x8xf32>
    %17 = vector.extract_strided_slice %8 {offsets = [0, 0], sizes = [8, 8], strides = [1, 1]} : vector<8x32xbf16> to vector<8x8xbf16>
    %18 = vector.shape_cast %17 : vector<8x8xbf16> to vector<1x8x8xbf16>
    %19 = vector.extract_strided_slice %9 {offsets = [0, 0], sizes = [8, 8], strides = [1, 1]} : vector<8x32xbf16> to vector<8x8xbf16>
    %20 = vector.shape_cast %19 : vector<8x8xbf16> to vector<1x8x8xbf16>
    %21 = vector.extract_strided_slice %10 {offsets = [0, 0], sizes = [8, 8], strides = [1, 1]} : vector<8x32xbf16> to vector<8x8xbf16>
    %22 = vector.shape_cast %21 : vector<8x8xbf16> to vector<1x8x8xbf16>
    "tpu.trace_start"() <{level = 10 : i32, message = "bqd,bkd->bqk"}> : () -> ()
    %cst_15 = arith.constant dense<0.000000e+00> : vector<1x8x8xf32>
    %23 = tpu.matmul %18, %20, %cst_15 {dimension_numbers = #tpu.dot_dimension_numbers<[2], [2], [1], [1], [0, 0, 0, 1, 1, 1], [0], [0]>} : vector<1x8x8xbf16>, vector<1x8x8xbf16>, vector<1x8x8xf32> -> vector<1x8x8xf32>
    "tpu.trace_stop"() : () -> ()
    %24 = vector.broadcast %16 : vector<1x1x8xf32> to vector<1x8x8xf32>
    %25 = arith.addf %23, %24 : vector<1x8x8xf32>
    %cst_16 = arith.constant dense<0xFF800000> : vector<1x8xf32>
    %26 = vector.multi_reduction <maximumf>, %25, %cst_16 [2] : vector<1x8x8xf32> to vector<1x8xf32>
    %27 = vector.shape_cast %26 : vector<1x8xf32> to vector<1x8x1xf32>
    %28 = vector.broadcast %27 : vector<1x8x1xf32> to vector<1x8x8xf32>
    %29 = arith.subf %25, %28 : vector<1x8x8xf32>
    %30 = math.exp %29 : vector<1x8x8xf32>
    %cst_17 = arith.constant dense<0.000000e+00> : vector<1x8xf32>
    %31 = vector.multi_reduction <add>, %30, %cst_17 [2] : vector<1x8x8xf32> to vector<1x8xf32>
    %32 = vector.shape_cast %31 : vector<1x8xf32> to vector<1x8x1xf32>
    %33 = tpu.reciprocal %32 {approx = true} : vector<1x8x1xf32> -> vector<1x8x1xf32>
    %34 = vector.broadcast %33 : vector<1x8x1xf32> to vector<1x8x8xf32>
    %35 = arith.mulf %30, %34 : vector<1x8x8xf32>
    %36 = arith.truncf %35 : vector<1x8x8xf32> to vector<1x8x8xbf16>
    "tpu.trace_start"() <{level = 10 : i32, message = "bqk,bkd->bqd"}> : () -> ()
    %cst_18 = arith.constant dense<0.000000e+00> : vector<1x8x8xf32>
    %37 = tpu.matmul %36, %22, %cst_18 {dimension_numbers = #tpu.dot_dimension_numbers<[2], [1], [1], [2], [0, 0, 0, 1, 1, 2], [0], [0]>} : vector<1x8x8xbf16>, vector<1x8x8xbf16>, vector<1x8x8xf32> -> vector<1x8x8xf32>
    "tpu.trace_stop"() : () -> ()
    %38 = vector.shape_cast %37 : vector<1x8x8xf32> to vector<8x8xf32>
    %39 = arith.truncf %38 : vector<8x8xf32> to vector<8x8xbf16>
    %c0_19 = arith.constant 0 : index
    %c0_20 = arith.constant 0 : index
    %40 = vector.load %arg8[%c0_19, %c0_20] : memref<8x32xbf16, #tpu.memory_space<vmem>>, vector<8x8xbf16>
    tpu.vector_store %arg8[%c0_19, %c0_20], %39 {strides = array<i32>} : memref<8x32xbf16, #tpu.memory_space<vmem>>, vector<8x8xbf16>,
    %41 = vector.extract_strided_slice %8 {offsets = [0, 8], sizes = [8, 8], strides = [1, 1]} : vector<8x32xbf16> to vector<8x8xbf16>
    %42 = vector.shape_cast %41 : vector<8x8xbf16> to vector<1x8x8xbf16>
    %43 = vector.extract_strided_slice %9 {offsets = [0, 8], sizes = [8, 8], strides = [1, 1]} : vector<8x32xbf16> to vector<8x8xbf16>
    %44 = vector.shape_cast %43 : vector<8x8xbf16> to vector<1x8x8xbf16>
    %45 = vector.extract_strided_slice %10 {offsets = [0, 8], sizes = [8, 8], strides = [1, 1]} : vector<8x32xbf16> to vector<8x8xbf16>
    %46 = vector.shape_cast %45 : vector<8x8xbf16> to vector<1x8x8xbf16>
    "tpu.trace_start"() <{level = 10 : i32, message = "bqd,bkd->bqk"}> : () -> ()
    %cst_21 = arith.constant dense<0.000000e+00> : vector<1x8x8xf32>
    %47 = tpu.matmul %42, %44, %cst_21 {dimension_numbers = #tpu.dot_dimension_numbers<[2], [2], [1], [1], [0, 0, 0, 1, 1, 1], [0], [0]>} : vector<1x8x8xbf16>, vector<1x8x8xbf16>, vector<1x8x8xf32> -> vector<1x8x8xf32>
    "tpu.trace_stop"() : () -> ()
    %48 = vector.broadcast %16 : vector<1x1x8xf32> to vector<1x8x8xf32>
    %49 = arith.addf %47, %48 : vector<1x8x8xf32>
    %cst_22 = arith.constant dense<0xFF800000> : vector<1x8xf32>
    %50 = vector.multi_reduction <maximumf>, %49, %cst_22 [2] : vector<1x8x8xf32> to vector<1x8xf32>
    %51 = vector.shape_cast %50 : vector<1x8xf32> to vector<1x8x1xf32>
    %52 = vector.broadcast %51 : vector<1x8x1xf32> to vector<1x8x8xf32>
    %53 = arith.subf %49, %52 : vector<1x8x8xf32>
    %54 = math.exp %53 : vector<1x8x8xf32>
    %cst_23 = arith.constant dense<0.000000e+00> : vector<1x8xf32>
    %55 = vector.multi_reduction <add>, %54, %cst_23 [2] : vector<1x8x8xf32> to vector<1x8xf32>
    %56 = vector.shape_cast %55 : vector<1x8xf32> to vector<1x8x1xf32>
    %57 = tpu.reciprocal %56 {approx = true} : vector<1x8x1xf32> -> vector<1x8x1xf32>
    %58 = vector.broadcast %57 : vector<1x8x1xf32> to vector<1x8x8xf32>
    %59 = arith.mulf %54, %58 : vector<1x8x8xf32>
    %60 = arith.truncf %59 : vector<1x8x8xf32> to vector<1x8x8xbf16>
    "tpu.trace_start"() <{level = 10 : i32, message = "bqk,bkd->bqd"}> : () -> ()
    %cst_24 = arith.constant dense<0.000000e+00> : vector<1x8x8xf32>
    %61 = tpu.matmul %60, %46, %cst_24 {dimension_numbers = #tpu.dot_dimension_numbers<[2], [1], [1], [2], [0, 0, 0, 1, 1, 2], [0], [0]>} : vector<1x8x8xbf16>, vector<1x8x8xbf16>, vector<1x8x8xf32> -> vector<1x8x8xf32>
    "tpu.trace_stop"() : () -> ()
    %62 = vector.shape_cast %61 : vector<1x8x8xf32> to vector<8x8xf32>
    %63 = arith.truncf %62 : vector<8x8xf32> to vector<8x8xbf16>
    %c0_25 = arith.constant 0 : index
    %c8 = arith.constant 8 : index
    %64 = vector.load %arg8[%c0_25, %c8] : memref<8x32xbf16, #tpu.memory_space<vmem>>, vector<8x8xbf16>
    tpu.vector_store %arg8[%c0_25, %c8], %63 {strides = array<i32>} : memref<8x32xbf16, #tpu.memory_space<vmem>>, vector<8x8xbf16>,
    %65 = vector.extract_strided_slice %8 {offsets = [0, 16], sizes = [8, 8], strides = [1, 1]} : vector<8x32xbf16> to vector<8x8xbf16>
    %66 = vector.shape_cast %65 : vector<8x8xbf16> to vector<1x8x8xbf16>
    %67 = vector.extract_strided_slice %9 {offsets = [0, 16], sizes = [8, 8], strides = [1, 1]} : vector<8x32xbf16> to vector<8x8xbf16>
    %68 = vector.shape_cast %67 : vector<8x8xbf16> to vector<1x8x8xbf16>
    %69 = vector.extract_strided_slice %10 {offsets = [0, 16], sizes = [8, 8], strides = [1, 1]} : vector<8x32xbf16> to vector<8x8xbf16>
    %70 = vector.shape_cast %69 : vector<8x8xbf16> to vector<1x8x8xbf16>
    "tpu.trace_start"() <{level = 10 : i32, message = "bqd,bkd->bqk"}> : () -> ()
    %cst_26 = arith.constant dense<0.000000e+00> : vector<1x8x8xf32>
    %71 = tpu.matmul %66, %68, %cst_26 {dimension_numbers = #tpu.dot_dimension_numbers<[2], [2], [1], [1], [0, 0, 0, 1, 1, 1], [0], [0]>} : vector<1x8x8xbf16>, vector<1x8x8xbf16>, vector<1x8x8xf32> -> vector<1x8x8xf32>
    "tpu.trace_stop"() : () -> ()
    %72 = vector.broadcast %16 : vector<1x1x8xf32> to vector<1x8x8xf32>
    %73 = arith.addf %71, %72 : vector<1x8x8xf32>
    %cst_27 = arith.constant dense<0xFF800000> : vector<1x8xf32>
    %74 = vector.multi_reduction <maximumf>, %73, %cst_27 [2] : vector<1x8x8xf32> to vector<1x8xf32>
    %75 = vector.shape_cast %74 : vector<1x8xf32> to vector<1x8x1xf32>
    %76 = vector.broadcast %75 : vector<1x8x1xf32> to vector<1x8x8xf32>
    %77 = arith.subf %73, %76 : vector<1x8x8xf32>
    %78 = math.exp %77 : vector<1x8x8xf32>
    %cst_28 = arith.constant dense<0.000000e+00> : vector<1x8xf32>
    %79 = vector.multi_reduction <add>, %78, %cst_28 [2] : vector<1x8x8xf32> to vector<1x8xf32>
    %80 = vector.shape_cast %79 : vector<1x8xf32> to vector<1x8x1xf32>
    %81 = tpu.reciprocal %80 {approx = true} : vector<1x8x1xf32> -> vector<1x8x1xf32>
    %82 = vector.broadcast %81 : vector<1x8x1xf32> to vector<1x8x8xf32>
    %83 = arith.mulf %78, %82 : vector<1x8x8xf32>
    %84 = arith.truncf %83 : vector<1x8x8xf32> to vector<1x8x8xbf16>
    "tpu.trace_start"() <{level = 10 : i32, message = "bqk,bkd->bqd"}> : () -> ()
    %cst_29 = arith.constant dense<0.000000e+00> : vector<1x8x8xf32>
    %85 = tpu.matmul %84, %70, %cst_29 {dimension_numbers = #tpu.dot_dimension_numbers<[2], [1], [1], [2], [0, 0, 0, 1, 1, 2], [0], [0]>} : vector<1x8x8xbf16>, vector<1x8x8xbf16>, vector<1x8x8xf32> -> vector<1x8x8xf32>
    "tpu.trace_stop"() : () -> ()
    %86 = vector.shape_cast %85 : vector<1x8x8xf32> to vector<8x8xf32>
    %87 = arith.truncf %86 : vector<8x8xf32> to vector<8x8xbf16>
    %c0_30 = arith.constant 0 : index
    %c16 = arith.constant 16 : index
    %88 = vector.load %arg8[%c0_30, %c16] : memref<8x32xbf16, #tpu.memory_space<vmem>>, vector<8x8xbf16>
    tpu.vector_store %arg8[%c0_30, %c16], %87 {strides = array<i32>} : memref<8x32xbf16, #tpu.memory_space<vmem>>, vector<8x8xbf16>,
    %89 = vector.extract_strided_slice %8 {offsets = [0, 24], sizes = [8, 8], strides = [1, 1]} : vector<8x32xbf16> to vector<8x8xbf16>
    %90 = vector.shape_cast %89 : vector<8x8xbf16> to vector<1x8x8xbf16>
    %91 = vector.extract_strided_slice %9 {offsets = [0, 24], sizes = [8, 8], strides = [1, 1]} : vector<8x32xbf16> to vector<8x8xbf16>
    %92 = vector.shape_cast %91 : vector<8x8xbf16> to vector<1x8x8xbf16>
    %93 = vector.extract_strided_slice %10 {offsets = [0, 24], sizes = [8, 8], strides = [1, 1]} : vector<8x32xbf16> to vector<8x8xbf16>
    %94 = vector.shape_cast %93 : vector<8x8xbf16> to vector<1x8x8xbf16>
    "tpu.trace_start"() <{level = 10 : i32, message = "bqd,bkd->bqk"}> : () -> ()
    %cst_31 = arith.constant dense<0.000000e+00> : vector<1x8x8xf32>
    %95 = tpu.matmul %90, %92, %cst_31 {dimension_numbers = #tpu.dot_dimension_numbers<[2], [2], [1], [1], [0, 0, 0, 1, 1, 1], [0], [0]>} : vector<1x8x8xbf16>, vector<1x8x8xbf16>, vector<1x8x8xf32> -> vector<1x8x8xf32>
    "tpu.trace_stop"() : () -> ()
    %96 = vector.broadcast %16 : vector<1x1x8xf32> to vector<1x8x8xf32>
    %97 = arith.addf %95, %96 : vector<1x8x8xf32>
    %cst_32 = arith.constant dense<0xFF800000> : vector<1x8xf32>
    %98 = vector.multi_reduction <maximumf>, %97, %cst_32 [2] : vector<1x8x8xf32> to vector<1x8xf32>
    %99 = vector.shape_cast %98 : vector<1x8xf32> to vector<1x8x1xf32>
    %100 = vector.broadcast %99 : vector<1x8x1xf32> to vector<1x8x8xf32>
    %101 = arith.subf %97, %100 : vector<1x8x8xf32>
    %102 = math.exp %101 : vector<1x8x8xf32>
    %cst_33 = arith.constant dense<0.000000e+00> : vector<1x8xf32>
    %103 = vector.multi_reduction <add>, %102, %cst_33 [2] : vector<1x8x8xf32> to vector<1x8xf32>
    %104 = vector.shape_cast %103 : vector<1x8xf32> to vector<1x8x1xf32>
    %105 = tpu.reciprocal %104 {approx = true} : vector<1x8x1xf32> -> vector<1x8x1xf32>
    %106 = vector.broadcast %105 : vector<1x8x1xf32> to vector<1x8x8xf32>
    %107 = arith.mulf %102, %106 : vector<1x8x8xf32>
    %108 = arith.truncf %107 : vector<1x8x8xf32> to vector<1x8x8xbf16>
    "tpu.trace_start"() <{level = 10 : i32, message = "bqk,bkd->bqd"}> : () -> ()
    %cst_34 = arith.constant dense<0.000000e+00> : vector<1x8x8xf32>
    %109 = tpu.matmul %108, %94, %cst_34 {dimension_numbers = #tpu.dot_dimension_numbers<[2], [1], [1], [2], [0, 0, 0, 1, 1, 2], [0], [0]>} : vector<1x8x8xbf16>, vector<1x8x8xbf16>, vector<1x8x8xf32> -> vector<1x8x8xf32>
    "tpu.trace_stop"() : () -> ()
    %110 = vector.shape_cast %109 : vector<1x8x8xf32> to vector<8x8xf32>
    %111 = arith.truncf %110 : vector<8x8xf32> to vector<8x8xbf16>
    %c0_35 = arith.constant 0 : index
    %c24 = arith.constant 24 : index
    %112 = vector.load %arg8[%c0_35, %c24] : memref<8x32xbf16, #tpu.memory_space<vmem>>, vector<8x8xbf16>
    tpu.vector_store %arg8[%c0_35, %c24], %111 {strides = array<i32>} : memref<8x32xbf16, #tpu.memory_space<vmem>>, vector<8x8xbf16>,
    %c0_36 = arith.constant 0 : index
    %c0_37 = arith.constant 0 : index
    %113 = vector.load %arg8[%c0_36, %c0_37] : memref<8x32xbf16, #tpu.memory_space<vmem>>, vector<8x32xbf16>
    %c0_38 = arith.constant 0 : index
    %c0_39 = arith.constant 0 : index
    %114 = vector.load %arg6[%c0_38, %c0_39] : memref<32x32xbf16, #tpu.memory_space<vmem>>, vector<32x32xbf16>
    %cst_40 = arith.constant dense<0.000000e+00> : vector<8x32xf32>
    %115 = tpu.matmul %113, %114, %cst_40 {dimension_numbers = #tpu.dot_dimension_numbers<[1], [0], [0], [1], [0, 0, 1, 1], [], []>} : vector<8x32xbf16>, vector<32x32xbf16>, vector<8x32xf32> -> vector<8x32xf32>
    %116 = vector.shape_cast %115 : vector<8x32xf32> to vector<1x8x32xf32>
    %c0_41 = arith.constant 0 : index
    %c0_42 = arith.constant 0 : index
    %c0_43 = arith.constant 0 : index
    %117 = vector.load %arg7[%c0_41, %c0_42, %c0_43] : memref<1x8x32xf32, #tpu.memory_space<vmem>>, vector<1x8x32xf32>
    tpu.vector_store %arg7[%c0_41, %c0_42, %c0_43], %116 {strides = array<i32>} : memref<1x8x32xf32, #tpu.memory_space<vmem>>, vector<1x8x32xf32>,
    return
  }
  func.func @transform_0(%arg0: i32) -> (i32, i32, i32) {
    %c0_i32 = arith.constant 0 : i32
    %c0_i32_0 = arith.constant 0 : i32
    %c0_i32_1 = arith.constant 0 : i32
    return %arg0, %c0_i32, %c0_i32_0 : i32, i32, i32
  }
  func.func @transform_1(%arg0: i32) -> (i32, i32, i32) {
    %c0_i32 = arith.constant 0 : i32
    %c0_i32_0 = arith.constant 0 : i32
    %c0_i32_1 = arith.constant 0 : i32
    return %arg0, %c0_i32, %c0_i32_0 : i32, i32, i32
  }
  func.func @transform_2(%arg0: i32) -> (i32, i32) {
    %c0_i32 = arith.constant 0 : i32
    %c0_i32_0 = arith.constant 0 : i32
    %c0_i32_1 = arith.constant 0 : i32
    return %c0_i32, %c0_i32_0 : i32, i32
  }
  func.func @transform_3(%arg0: i32) -> (i32, i32) {
    %c0_i32 = arith.constant 0 : i32
    %c0_i32_0 = arith.constant 0 : i32
    %c0_i32_1 = arith.constant 0 : i32
    return %c0_i32, %c0_i32_0 : i32, i32
  }
  func.func @transform_4(%arg0: i32) -> (i32, i32) {
    %c0_i32 = arith.constant 0 : i32
    %c0_i32_0 = arith.constant 0 : i32
    %c0_i32_1 = arith.constant 0 : i32
    return %c0_i32, %c0_i32_0 : i32, i32
  }
  func.func @transform_5(%arg0: i32) -> (i32, i32) {
    %c0_i32 = arith.constant 0 : i32
    %c0_i32_0 = arith.constant 0 : i32
    %c0_i32_1 = arith.constant 0 : i32
    return %c0_i32, %c0_i32_0 : i32, i32
  }
  func.func @transform_6(%arg0: i32) -> (i32, i32, i32) {
    %c0_i32 = arith.constant 0 : i32
    %c0_i32_0 = arith.constant 0 : i32
    %c0_i32_1 = arith.constant 0 : i32
    return %arg0, %c0_i32, %c0_i32_0 : i32, i32, i32
  }
}

</mosaic_0001>

<llo_original>
// kernel: tpu_custom_call.1
$region0: #{tpu_custom_call.1}
  #allocation0 [shape = 'u32[]', space=smem, size = 0x4, offset = 0x4, fixed_abs, tag = 'smem constant byte address 0x4 - core index']
  #allocation1 [shape = 'u32[144,128]{1,0:T(1,128)}', space=vmem, size = 0x12000, scoped, tag = 'internal scratch']
  #allocation2 [shape = 'bf16[8,32]{1,0:T(8,128)(2,1)}', space=vmem, size = 0x800, scoped, tag = 'scratch operand']
  %s0 = inlined_call_operand.hbm [shape: bf16[2,8,32], index: 0, kind: input, shape index: {}]
  %s1 = inlined_call_operand.vmem [shape: s32[2,1,8], index: 1, kind: input, shape index: {}]
  %s2 = inlined_call_operand.hbm [shape: bf16[32,32], index: 2, kind: input, shape index: {}]
  %s3 = inlined_call_operand.hbm [shape: bf16[32,32], index: 3, kind: input, shape index: {}]
  %s4 = inlined_call_operand.hbm [shape: bf16[32,32], index: 4, kind: input, shape index: {}]
  %s5 = inlined_call_operand.vmem [shape: bf16[32,32], index: 5, kind: input, shape index: {}]
  %s6 = inlined_call_operand.hbm [shape: f32[2,8,32], index: 6, kind: output, shape index: {}]
  %s7 = sld [smem:[#allocation0]]
  $region73: #{tpu_custom_call.1} parent=0
    _
  %s9 = ssub.s32 1, %s7
  %s10 = scalar_select 0, %s9, %s7
  $region1: #{tpu_custom_call.1} parent=0
    #allocation3 [shape = 'u8[4096]{0}', space=vmem, size = 0x1000, scoped, tag = 'input window, operand 0']
    #allocation4 [shape = 's32[2]{0}', space=sflag, size = 0x8, scoped, tag = 'scoped memory for tpu_custom_call.1']
    #allocation5 [shape = 's32[2]{0}', space=sflag, size = 0x8, scoped, tag = 'scoped memory for tpu_custom_call.1']
    #allocation6 [shape = 'u8[8192]{0}', space=vmem, size = 0x2000, scoped, tag = 'input window, operand 2, single buffered']
    #allocation7 [shape = 's32[1]{0}', space=sflag, size = 0x4, scoped, tag = 'scoped memory for tpu_custom_call.1']
    #allocation8 [shape = 'u8[8192]{0}', space=vmem, size = 0x2000, scoped, tag = 'input window, operand 3, single buffered']
    #allocation9 [shape = 'u8[8192]{0}', space=vmem, size = 0x2000, scoped, tag = 'input window, operand 4, single buffered']
    #allocation10 [shape = 's32[1]{0}', space=sflag, size = 0x4, scoped, tag = 'scoped memory for tpu_custom_call.1']
    #allocation11 [shape = 'u8[8192]{0}', space=vmem, size = 0x2000, scoped, tag = 'output window, operand 0']
    %11 = vsyncpa [#allocation4], 0
    %s12 = scalar_lea.sflag [#allocation4], 1
    %13 = vsyncpa %s12, 0
    %14 = vsyncpa [#allocation7], 0
    %15 = vsyncpa [#allocation10], 0
    %16 = vsyncpa [#allocation5], 0
    %s17 = scalar_lea.sflag [#allocation5], 1
    %18 = vsyncpa %s17, 0
    loop: start=0, step=1, limit=4
    $region2: #{tpu_custom_call.1} parent=1 // loop_pre_header
      _
    $region3: #{tpu_custom_call.1} parent=1 // loop_header
      %s20 = sphi 0, %s24
      %p21 = scmp.ge.s32.totalorder %s20, 4
      %s30 = sphi 0, %s32
      %s33 = sphi 0, %s30
      %s34 = sphi 0, %s33
      %s50 = sphi 0, %s34
      %s56 = sphi 0, %s58
      %s59 = sphi 0, %s56
      %s60 = sphi 0, %s59
      %s76 = sphi 0, %s60
      %s80 = sphi 0, %s80
      %s82 = sphi 0, %s80
      %s83 = sphi 0, %s82
      %s97 = sphi 0, %s83
      %s101 = sphi 0, %s101
      %s103 = sphi 0, %s101
      %s104 = sphi 0, %s103
      %s118 = sphi 0, %s104
      %s122 = sphi 0, %s122
      %s124 = sphi 0, %s122
      %s125 = sphi 0, %s124
      %s139 = sphi 0, %s125
      %s143 = sphi 0, %s143
      %s145 = sphi 0, %s143
      %s146 = sphi 0, %s145
      %s160 = sphi 0, %s146
      %s166 = sphi 0, %s168
      %s169 = sphi 0, %s166
      %s170 = sphi 0, %s169
      %s186 = sphi 0, %s170
    $region4: #{tpu_custom_call.1} parent=1 // loop_header_branch
      %23 = sbr.rel (%p21) target = $region8
    $region5: #{tpu_custom_call.1} parent=1 // loop_body
      %s25 = ssub.s32 %s20, 1
      %s26 = ssub.s32 %s20, 2
      %s27 = sadd.s32 %s20, 1
      %s28 = ssub.s32 %s20, %s27
      %p29 = scmp.eq.s32.totalorder %s28, 0
      %s31 = sadd.s32 %s30, 1
      %s32 = scalar_select %p29, %s30, %s31
      %p35 = pneg %p29
      %p36 = scmp.eq.s32.totalorder %s20, 1
      %p37 = por %p35, %p36
      %p38 = scmp.ne.s32.totalorder %s30, %s33
      %p39 = scmp.eq.s32.totalorder %s20, 0
      %p40 = por %p38, %p39
      %p41 = scmp.ne.s32.totalorder %s30, %s33
      %p42 = scmp.eq.s32.totalorder %s25, 1
      %p43 = por %p41, %p42
      %p44 = scmp.ne.s32.totalorder %s33, %s34
      %p45 = scmp.eq.s32.totalorder %s25, 0
      %p46 = por %p44, %p45
      %p47 = scmp.ne.s32.totalorder %s33, %s34
      %p48 = scmp.eq.s32.totalorder %s26, 1
      %p49 = por %p47, %p48
      %p51 = scmp.ne.s32.totalorder %s34, %s50
      %p52 = scmp.eq.s32.totalorder %s26, 0
      %p53 = por %p51, %p52
      %s54 = ssub.s32 %s20, %s27
      %p55 = scmp.eq.s32.totalorder %s54, 0
      %s57 = sadd.s32 %s56, 1
      %s58 = scalar_select %p55, %s56, %s57
      %p61 = pneg %p55
      %p62 = scmp.eq.s32.totalorder %s20, 1
      %p63 = por %p61, %p62
      %p64 = scmp.ne.s32.totalorder %s56, %s59
      %p65 = scmp.eq.s32.totalorder %s20, 0
      %p66 = por %p64, %p65
      %p67 = scmp.ne.s32.totalorder %s56, %s59
      %p68 = scmp.eq.s32.totalorder %s25, 1
      %p69 = por %p67, %p68
      %p70 = scmp.ne.s32.totalorder %s59, %s60
      %p71 = scmp.eq.s32.totalorder %s25, 0
      %p72 = por %p70, %p71
      %p73 = scmp.ne.s32.totalorder %s59, %s60
      %p74 = scmp.eq.s32.totalorder %s26, 1
      %p75 = por %p73, %p74
      %p77 = scmp.ne.s32.totalorder %s60, %s76
      %p78 = scmp.eq.s32.totalorder %s26, 0
      %p79 = por %p77, %p78
      %s81 = sadd.s32 %s80, 1
      %p84 = scmp.eq.s32.totalorder %s20, 1
      %p85 = scmp.ne.s32.totalorder %s80, %s82
      %p86 = scmp.eq.s32.totalorder %s20, 0
      %p87 = por %p85, %p86
      %p88 = scmp.ne.s32.totalorder %s80, %s82
      %p89 = scmp.eq.s32.totalorder %s25, 1
      %p90 = por %p88, %p89
      %p91 = scmp.ne.s32.totalorder %s82, %s83
      %p92 = scmp.eq.s32.totalorder %s25, 0
      %p93 = por %p91, %p92
      %p94 = scmp.ne.s32.totalorder %s82, %s83
      %p95 = scmp.eq.s32.totalorder %s26, 1
      %p96 = por %p94, %p95
      %p98 = scmp.ne.s32.totalorder %s83, %s97
      %p99 = scmp.eq.s32.totalorder %s26, 0
      %p100 = por %p98, %p99
      %s102 = sadd.s32 %s101, 1
      %p105 = scmp.eq.s32.totalorder %s20, 1
      %p106 = scmp.ne.s32.totalorder %s101, %s103
      %p107 = scmp.eq.s32.totalorder %s20, 0
      %p108 = por %p106, %p107
      %p109 = scmp.ne.s32.totalorder %s101, %s103
      %p110 = scmp.eq.s32.totalorder %s25, 1
      %p111 = por %p109, %p110
      %p112 = scmp.ne.s32.totalorder %s103, %s104
      %p113 = scmp.eq.s32.totalorder %s25, 0
      %p114 = por %p112, %p113
      %p115 = scmp.ne.s32.totalorder %s103, %s104
      %p116 = scmp.eq.s32.totalorder %s26, 1
      %p117 = por %p115, %p116
      %p119 = scmp.ne.s32.totalorder %s104, %s118
      %p120 = scmp.eq.s32.totalorder %s26, 0
      %p121 = por %p119, %p120
      %s123 = sadd.s32 %s122, 1
      %p126 = scmp.eq.s32.totalorder %s20, 1
      %p127 = scmp.ne.s32.totalorder %s122, %s124
      %p128 = scmp.eq.s32.totalorder %s20, 0
      %p129 = por %p127, %p128
      %p130 = scmp.ne.s32.totalorder %s122, %s124
      %p131 = scmp.eq.s32.totalorder %s25, 1
      %p132 = por %p130, %p131
      %p133 = scmp.ne.s32.totalorder %s124, %s125
      %p134 = scmp.eq.s32.totalorder %s25, 0
      %p135 = por %p133, %p134
      %p136 = scmp.ne.s32.totalorder %s124, %s125
      %p137 = scmp.eq.s32.totalorder %s26, 1
      %p138 = por %p136, %p137
      %p140 = scmp.ne.s32.totalorder %s125, %s139
      %p141 = scmp.eq.s32.totalorder %s26, 0
      %p142 = por %p140, %p141
      %s144 = sadd.s32 %s143, 1
      %p147 = scmp.eq.s32.totalorder %s20, 1
      %p148 = scmp.ne.s32.totalorder %s143, %s145
      %p149 = scmp.eq.s32.totalorder %s20, 0
      %p150 = por %p148, %p149
      %p151 = scmp.ne.s32.totalorder %s143, %s145
      %p152 = scmp.eq.s32.totalorder %s25, 1
      %p153 = por %p151, %p152
      %p154 = scmp.ne.s32.totalorder %s145, %s146
      %p155 = scmp.eq.s32.totalorder %s25, 0
      %p156 = por %p154, %p155
      %p157 = scmp.ne.s32.totalorder %s145, %s146
      %p158 = scmp.eq.s32.totalorder %s26, 1
      %p159 = por %p157, %p158
      %p161 = scmp.ne.s32.totalorder %s146, %s160
      %p162 = scmp.eq.s32.totalorder %s26, 0
      %p163 = por %p161, %p162
      %s164 = ssub.s32 %s20, %s27
      %p165 = scmp.eq.s32.totalorder %s164, 0
      %s167 = sadd.s32 %s166, 1
      %s168 = scalar_select %p165, %s166, %s167
      %p171 = pneg %p165
      %p172 = scmp.eq.s32.totalorder %s20, 1
      %p173 = por %p171, %p172
      %p174 = scmp.ne.s32.totalorder %s166, %s169
      %p175 = scmp.eq.s32.totalorder %s20, 0
      %p176 = por %p174, %p175
      %p177 = scmp.ne.s32.totalorder %s166, %s169
      %p178 = scmp.eq.s32.totalorder %s25, 1
      %p179 = por %p177, %p178
      %p180 = scmp.ne.s32.totalorder %s169, %s170
      %p181 = scmp.eq.s32.totalorder %s25, 0
      %p182 = por %p180, %p181
      %p183 = scmp.ne.s32.totalorder %s169, %s170
      %p184 = scmp.eq.s32.totalorder %s26, 1
      %p185 = por %p183, %p184
      %p187 = scmp.ne.s32.totalorder %s170, %s186
      %p188 = scmp.eq.s32.totalorder %s26, 0
      %p189 = por %p187, %p188
      %p190 = scmp.le.s32.totalorder 1, %s20
      %p191 = scmp.lt.s32.totalorder %s20, 3
      %p192 = pnand %p190, %p191
      %p193 = pneg %p192
      // Predicated region
      $region9: #{tpu_custom_call.1} parent=5 // pred_check
        _
      $region10: #{tpu_custom_call.1} parent=5 // pred_check_branch
        %195 = sbr.rel (%p192) target = $region12
      $region11: #{tpu_custom_call.1} parent=5 // pred_region
        %s196 = ssub.s32 %s20, 1
        // Predicated region
        $region13: #{tpu_custom_call.1} parent=11 // pred_check
          %p197 = pneg %p93
        $region14: #{tpu_custom_call.1} parent=11 // pred_check_branch
          %199 = sbr.rel (%p197) target = $region16
        $region15: #{tpu_custom_call.1} parent=11 // pred_region
          %s201 = ssub.s32 256, 256
          %202 = vsyncadd [#allocation7], %s201
          %s203 = sshll.u32 [#allocation6], 4
          %s204 = int_to_ptr.vmem [resolvable:$true] %s203
          %209 = dma.hbm_to_vmem [thread:$0]  %s2, 256, %s204, [#allocation7], 64, 64, 4
        $region16: #{tpu_custom_call.1} parent=11 // pred_fallthru
          _
        // Predicated region
        $region17: #{tpu_custom_call.1} parent=11 // pred_check
          %p210 = pneg %p114
        $region18: #{tpu_custom_call.1} parent=11 // pred_check_branch
          %212 = sbr.rel (%p210) target = $region20
        $region19: #{tpu_custom_call.1} parent=11 // pred_region
          %s214 = ssub.s32 256, 256
          %215 = vsyncadd [#allocation7], %s214
          %s216 = sshll.u32 [#allocation8], 4
          %s217 = int_to_ptr.vmem [resolvable:$true] %s216
          %222 = dma.hbm_to_vmem [thread:$0]  %s3, 256, %s217, [#allocation7], 64, 64, 4
        $region20: #{tpu_custom_call.1} parent=11 // pred_fallthru
          _
        // Predicated region
        $region21: #{tpu_custom_call.1} parent=11 // pred_check
          %p223 = pneg %p135
        $region22: #{tpu_custom_call.1} parent=11 // pred_check_branch
          %225 = sbr.rel (%p223) target = $region24
        $region23: #{tpu_custom_call.1} parent=11 // pred_region
          %s227 = ssub.s32 256, 256
          %228 = vsyncadd [#allocation10], %s227
          %s229 = sshll.u32 [#allocation9], 4
          %s230 = int_to_ptr.vmem [resolvable:$true] %s229
          %235 = dma.hbm_to_vmem [thread:$0]  %s4, 256, %s230, [#allocation10], 64, 64, 4
        $region24: #{tpu_custom_call.1} parent=11 // pred_fallthru
          _
        // Predicated region
        $region25: #{tpu_custom_call.1} parent=11 // pred_check
          %p236 = pneg %p156
        $region26: #{tpu_custom_call.1} parent=11 // pred_check_branch
          %238 = sbr.rel (%p236) target = $region28
        $region27: #{tpu_custom_call.1} parent=11 // pred_region
          _
        $region28: #{tpu_custom_call.1} parent=11 // pred_fallthru
          _
      $region12: #{tpu_custom_call.1} parent=5 // pred_fallthru
        _
      %p239 = scmp.lt.s32.totalorder %s20, 2
      // Predicated region
      $region29: #{tpu_custom_call.1} parent=5 // pred_check
        %p240 = pneg %p239
      $region30: #{tpu_custom_call.1} parent=5 // pred_check_branch
        %242 = sbr.rel (%p240) target = $region32
      $region31: #{tpu_custom_call.1} parent=5 // pred_region
        // Predicated region
        $region33: #{tpu_custom_call.1} parent=31 // pred_check
          %p243 = pneg %p40
        $region34: #{tpu_custom_call.1} parent=31 // pred_check_branch
          %245 = sbr.rel (%p243) target = $region36
        $region35: #{tpu_custom_call.1} parent=31 // pred_region
          %s246 = sand.u32 %s30, 1
          %s247 = scalar_lea.sflag [#allocation4], %s246
          %s248 = sand.u32 %s30, 1
          %s249 = smul.addr %s248, 4
          %s250 = scalar_lea.vmem [#allocation3], %s249
          %s252 = ssub.s32 64, 64
          %253 = vsyncadd %s247, %s252
          %s254 = smul.addr %s20, 64
          %s255 = scalar_lea.hbm %s0, %s254
          %s257 = sshll.u32 %s250, 4
          %s258 = int_to_ptr.vmem [resolvable:$true] %s257
          %260 = dma.hbm_to_vmem [thread:$0]  %s255, 64, %s258, %s247
        $region36: #{tpu_custom_call.1} parent=31 // pred_fallthru
          _
        // Predicated region
        $region37: #{tpu_custom_call.1} parent=31 // pred_check
          %p261 = pneg %p66
        $region38: #{tpu_custom_call.1} parent=31 // pred_check_branch
          %263 = sbr.rel (%p261) target = $region40
        $region39: #{tpu_custom_call.1} parent=31 // pred_region
          %p264 = scmp.lt.s32.totalorder %s20, 1
          %s265 = scalar_select %p264, %s20, 1
          %s266 = scalar_lea.vmem %s1, %s265
        $region40: #{tpu_custom_call.1} parent=31 // pred_fallthru
          _
      $region32: #{tpu_custom_call.1} parent=5 // pred_fallthru
        _
      %p267 = scmp.le.s32.totalorder 1, %s20
      %p268 = scmp.lt.s32.totalorder %s20, 3
      %p269 = pnand %p267, %p268
      %p270 = pneg %p269
      // Predicated region
      $region41: #{tpu_custom_call.1} parent=5 // pred_check
        _
      $region42: #{tpu_custom_call.1} parent=5 // pred_check_branch
        %272 = sbr.rel (%p269) target = $region44
      $region43: #{tpu_custom_call.1} parent=5 // pred_region
        %s273 = ssub.s32 %s20, 1
        %s274 = sand.u32 %s33, 1
        %s275 = scalar_lea.sflag [#allocation4], %s274
        %s276 = sand.u32 %s33, 1
        %s277 = smul.addr %s276, 4
        %s278 = scalar_lea.vmem [#allocation3], %s277
        // Predicated region
        $region45: #{tpu_custom_call.1} parent=43 // pred_check
          %p279 = pneg %p46
        $region46: #{tpu_custom_call.1} parent=43 // pred_check_branch
          %281 = sbr.rel (%p279) target = $region48
        $region47: #{tpu_custom_call.1} parent=43 // pred_region
          %282 = dma.done %s275, 64
        $region48: #{tpu_custom_call.1} parent=43 // pred_fallthru
          _
        // Predicated region
        $region49: #{tpu_custom_call.1} parent=43 // pred_check
          %p283 = pneg %p93
        $region50: #{tpu_custom_call.1} parent=43 // pred_check_branch
          %285 = sbr.rel (%p283) target = $region52
        $region51: #{tpu_custom_call.1} parent=43 // pred_region
          %286 = dma.done [#allocation7], 256
        $region52: #{tpu_custom_call.1} parent=43 // pred_fallthru
          _
        // Predicated region
        $region53: #{tpu_custom_call.1} parent=43 // pred_check
          %p287 = pneg %p114
        $region54: #{tpu_custom_call.1} parent=43 // pred_check_branch
          %289 = sbr.rel (%p287) target = $region56
        $region55: #{tpu_custom_call.1} parent=43 // pred_region
          %290 = dma.done [#allocation7], 256
        $region56: #{tpu_custom_call.1} parent=43 // pred_fallthru
          _
        // Predicated region
        $region57: #{tpu_custom_call.1} parent=43 // pred_check
          %p291 = pneg %p135
        $region58: #{tpu_custom_call.1} parent=43 // pred_check_branch
          %293 = sbr.rel (%p291) target = $region60
        $region59: #{tpu_custom_call.1} parent=43 // pred_region
          %294 = dma.done [#allocation10], 256
        $region60: #{tpu_custom_call.1} parent=43 // pred_fallthru
          _
        %s295 = sand.u32 %s33, 1
        %s296 = scalar_lea.sflag [#allocation4], %s295
        %s297 = sand.u32 %s33, 1
        %s298 = smul.addr %s297, 4
        %s299 = scalar_lea.vmem [#allocation3], %s298
        %p300 = pneg %p46
        %p301 = pneg %p43
        %p302 = scmp.lt.s32.totalorder %s25, 1
        %s303 = scalar_select %p302, %s25, 1
        %s304 = scalar_lea.vmem %s1, %s303
        %p305 = pneg %p72
        %p306 = pneg %p69
        %p307 = pneg %p93
        %p308 = pneg %p90
        %p309 = pneg %p114
        %p310 = pneg %p111
        %p311 = pneg %p135
        %p312 = pneg %p132
        %p313 = pneg %p156
        %p314 = pneg %p153
        %p315 = pneg %p182
        %p316 = pneg %p179
        %s317 = sand.u32 %s169, 1
        %s318 = scalar_lea.sflag [#allocation5], %s317
        %s319 = sand.u32 %s169, 1
        %s320 = smul.addr %s319, 8
        %s321 = scalar_lea.vmem [#allocation11], %s320
        %p322 = scmp.lt.s32.totalorder %s25, 1
        %s323 = scalar_select %p322, %s25, 1
        %s324 = scalar_lea.vmem %s1, %s323
        %v326 = vld [vmem:[%s278] sm:$0xf]
        %v327 = vld [vmem:[#allocation6] sm:$0xf]
        %v328 = vld [vmem:[#allocation6 + $0x4] sm:$0xf]
        %v329 = vld [vmem:[#allocation6 + $0x8] sm:$0xf]
        %v330 = vld [vmem:[#allocation6 + $0xc] sm:$0xf]
        %v335 = vunpack.c.l.b16 %v327
        %v336 = vunpack.c.l.b16 %v328
        %v337 = vunpack.c.l.b16 %v329
        %v338 = vunpack.c.l.b16 %v330
        %v339 = vpack.c.b16 %v336, %v335
        %v340 = vpack.c.b16 %v338, %v337
        %vm343 = vcmask 261120
        %v345 = vsel %vm343, %v326, 0
        %347 = vmatprep.subr.bf16.mxu0 0
        %348 = vmatpush1.bf16.msra.mxu0 %v339
        %349 = vmatprep.subr.bf16.mxu0 0
        %350 = vmatpush1.bf16.msra.mxu0 %v340
        %351 = vmatprep.subr.bf16.mxu0 0
        %352 = vmatpush1.bf16.msra.mxu0 0
        %353 = vmatprep.subr.bf16.mxu0 0
        %354 = vmatpush1.bf16.msra.mxu0 0
        %355 = vmatprep.subr.bf16.mxu0 0
        %356 = vmatpush1.bf16.msra.mxu0 0
        %357 = vmatprep.subr.bf16.mxu0 0
        %358 = vmatpush1.bf16.msra.mxu0 0
        %359 = vmatprep.subr.bf16.mxu0 0
        %360 = vmatpush1.bf16.msra.mxu0 0
        %361 = vmatprep.subr.bf16.mxu0 0
        %362 = vmatpush1.bf16.msra.mxu0 0
        %363 = vmatprep.subr.bf16.mxu0 0
        %364 = vmatpush1.bf16.msra.mxu0 0
        %365 = vmatprep.subr.bf16.mxu0 0
        %366 = vmatpush1.bf16.msra.mxu0 0
        %367 = vmatprep.subr.bf16.mxu0 0
        %368 = vmatpush1.bf16.msra.mxu0 0
        %369 = vmatprep.subr.bf16.mxu0 0
        %370 = vmatpush1.bf16.msra.mxu0 0
        %371 = vmatprep.subr.bf16.mxu0 0
        %372 = vmatpush1.bf16.msra.mxu0 0
        %373 = vmatprep.subr.bf16.mxu0 0
        %374 = vmatpush1.bf16.msra.mxu0 0
        %375 = vmatprep.subr.bf16.mxu0 0
        %376 = vmatpush1.bf16.msra.mxu0 0
        %377 = vmatprep.subr.bf16.mxu0 0
        %378 = vmatpush1.bf16.msra.mxu0 0
        %379 = vmatprep.mubr.bf16.mxu0 0
        %380 = vmatmul.mubr.bf16.gmra.mrb[0].mxu0 %v345
        %v381 = vpop.f32.mrb[0].mxu0
        %v382 = vadd.f32 0.0, %v381
        %v383 = vpop.f32.mrb[0].mxu0
        %v384 = vpop.f32.mrb[0].mxu0
        %v385 = vpop.f32.mrb[0].mxu0
        %386 = vdwg.mxu0
        %v387 = vld [vmem:[#allocation8] sm:$0xf]
        %v388 = vld [vmem:[#allocation8 + $0x4] sm:$0xf]
        %v389 = vld [vmem:[#allocation8 + $0x8] sm:$0xf]
        %v390 = vld [vmem:[#allocation8 + $0xc] sm:$0xf]
        %v395 = vunpack.c.l.b16 %v387
        %v396 = vunpack.c.l.b16 %v388
        %v397 = vunpack.c.l.b16 %v389
        %v398 = vunpack.c.l.b16 %v390
        %v399 = vpack.c.b16 %v396, %v395
        %v400 = vpack.c.b16 %v398, %v397
        %403 = vmatprep.subr.bf16.mxu0 0
        %404 = vmatpush1.bf16.msra.mxu0 %v399
        %405 = vmatprep.subr.bf16.mxu0 0
        %406 = vmatpush1.bf16.msra.mxu0 %v400
        %407 = vmatprep.subr.bf16.mxu0 0
        %408 = vmatpush1.bf16.msra.mxu0 0
        %409 = vmatprep.subr.bf16.mxu0 0
        %410 = vmatpush1.bf16.msra.mxu0 0
        %411 = vmatprep.subr.bf16.mxu0 0
        %412 = vmatpush1.bf16.msra.mxu0 0
        %413 = vmatprep.subr.bf16.mxu0 0
        %414 = vmatpush1.bf16.msra.mxu0 0
        %415 = vmatprep.subr.bf16.mxu0 0
        %416 = vmatpush1.bf16.msra.mxu0 0
        %417 = vmatprep.subr.bf16.mxu0 0
        %418 = vmatpush1.bf16.msra.mxu0 0
        %419 = vmatprep.subr.bf16.mxu0 0
        %420 = vmatpush1.bf16.msra.mxu0 0
        %421 = vmatprep.subr.bf16.mxu0 0
        %422 = vmatpush1.bf16.msra.mxu0 0
        %423 = vmatprep.subr.bf16.mxu0 0
        %424 = vmatpush1.bf16.msra.mxu0 0
        %425 = vmatprep.subr.bf16.mxu0 0
        %426 = vmatpush1.bf16.msra.mxu0 0
        %427 = vmatprep.subr.bf16.mxu0 0
        %428 = vmatpush1.bf16.msra.mxu0 0
        %429 = vmatprep.subr.bf16.mxu0 0
        %430 = vmatpush1.bf16.msra.mxu0 0
        %431 = vmatprep.subr.bf16.mxu0 0
        %432 = vmatpush1.bf16.msra.mxu0 0
        %433 = vmatprep.subr.bf16.mxu0 0
        %434 = vmatpush1.bf16.msra.mxu0 0
        %435 = vmatprep.mubr.bf16.mxu0 0
        %436 = vmatmul.mubr.bf16.gmra.mrb[0].mxu0 %v345
        %v437 = vpop.f32.mrb[0].mxu0
        %v438 = vadd.f32 0.0, %v437
        %v439 = vpop.f32.mrb[0].mxu0
        %v440 = vpop.f32.mrb[0].mxu0
        %v441 = vpop.f32.mrb[0].mxu0
        %442 = vdwg.mxu0
        %v443 = vld [vmem:[#allocation9] sm:$0xf]
        %v444 = vld [vmem:[#allocation9 + $0x4] sm:$0xf]
        %v445 = vld [vmem:[#allocation9 + $0x8] sm:$0xf]
        %v446 = vld [vmem:[#allocation9 + $0xc] sm:$0xf]
        %v451 = vunpack.c.l.b16 %v443
        %v452 = vunpack.c.l.b16 %v444
        %v453 = vunpack.c.l.b16 %v445
        %v454 = vunpack.c.l.b16 %v446
        %v455 = vpack.c.b16 %v452, %v451
        %v456 = vpack.c.b16 %v454, %v453
        %459 = vmatprep.subr.bf16.mxu0 0
        %460 = vmatpush1.bf16.msra.mxu0 %v455
        %461 = vmatprep.subr.bf16.mxu0 0
        %462 = vmatpush1.bf16.msra.mxu0 %v456
        %463 = vmatprep.subr.bf16.mxu0 0
        %464 = vmatpush1.bf16.msra.mxu0 0
        %465 = vmatprep.subr.bf16.mxu0 0
        %466 = vmatpush1.bf16.msra.mxu0 0
        %467 = vmatprep.subr.bf16.mxu0 0
        %468 = vmatpush1.bf16.msra.mxu0 0
        %469 = vmatprep.subr.bf16.mxu0 0
        %470 = vmatpush1.bf16.msra.mxu0 0
        %471 = vmatprep.subr.bf16.mxu0 0
        %472 = vmatpush1.bf16.msra.mxu0 0
        %473 = vmatprep.subr.bf16.mxu0 0
        %474 = vmatpush1.bf16.msra.mxu0 0
        %475 = vmatprep.subr.bf16.mxu0 0
        %476 = vmatpush1.bf16.msra.mxu0 0
        %477 = vmatprep.subr.bf16.mxu0 0
        %478 = vmatpush1.bf16.msra.mxu0 0
        %479 = vmatprep.subr.bf16.mxu0 0
        %480 = vmatpush1.bf16.msra.mxu0 0
        %481 = vmatprep.subr.bf16.mxu0 0
        %482 = vmatpush1.bf16.msra.mxu0 0
        %483 = vmatprep.subr.bf16.mxu0 0
        %484 = vmatpush1.bf16.msra.mxu0 0
        %485 = vmatprep.subr.bf16.mxu0 0
        %486 = vmatpush1.bf16.msra.mxu0 0
        %487 = vmatprep.subr.bf16.mxu0 0
        %488 = vmatpush1.bf16.msra.mxu0 0
        %489 = vmatprep.subr.bf16.mxu0 0
        %490 = vmatpush1.bf16.msra.mxu0 0
        %491 = vmatprep.mubr.bf16.mxu0 0
        %492 = vmatmul.mubr.bf16.gmra.mrb[0].mxu0 %v345
        %v493 = vpop.f32.mrb[0].mxu0
        %v494 = vadd.f32 0.0, %v493
        %v495 = vpop.f32.mrb[0].mxu0
        %v496 = vpop.f32.mrb[0].mxu0
        %v497 = vpop.f32.mrb[0].mxu0
        %498 = vdwg.mxu0
        %v499 = vpack.c.bf16 %v382, %v382
        %v500 = vpack.c.bf16 %v438, %v438
        %v501 = vpack.c.bf16 %v494, %v494
        %v502 = vld [vmem:[%s324] sm:$0x1]
        %vm503 = vcmp.ne.s32.totalorder %v502, 0
        %v504 = vsel %vm503, 0.0, -1000000.0
        %v506 = vlaneseq
        %v507 = vshrl.u32 %v506, 7
        %v508 = vsub.s32 0, %v507
        %v509 = vrot.slane %v504, %v508
        %vm511 = vcmask 64512
        %v513 = vsel %vm511, %v499, 0
        %v516 = vsel %vm511, %v500, 0
        %518 = vmatprep.subr.bf16.mxu0 0
        %519 = vmatpush1.bf16.xpose.msra.mxu0 %v516
        %520 = vmatprep.subr.bf16.mxu0 0
        %521 = vmatpush1.bf16.xpose.msra.mxu0 0
        %522 = vmatprep.subr.bf16.mxu0 0
        %523 = vmatpush1.bf16.xpose.msra.mxu0 0
        %524 = vmatprep.subr.bf16.mxu0 0
        %525 = vmatpush1.bf16.xpose.msra.mxu0 0
        %526 = vmatprep.subr.bf16.mxu0 0
        %527 = vmatpush1.bf16.xpose.msra.mxu0 0
        %528 = vmatprep.subr.bf16.mxu0 0
        %529 = vmatpush1.bf16.xpose.msra.mxu0 0
        %530 = vmatprep.subr.bf16.mxu0 0
        %531 = vmatpush1.bf16.xpose.msra.mxu0 0
        %532 = vmatprep.subr.bf16.mxu0 0
        %533 = vmatpush1.bf16.xpose.msra.mxu0 0
        %534 = vmatprep.subr.bf16.mxu0 0
        %535 = vmatpush1.bf16.xpose.msra.mxu0 0
        %536 = vmatprep.subr.bf16.mxu0 0
        %537 = vmatpush1.bf16.xpose.msra.mxu0 0
        %538 = vmatprep.subr.bf16.mxu0 0
        %539 = vmatpush1.bf16.xpose.msra.mxu0 0
        %540 = vmatprep.subr.bf16.mxu0 0
        %541 = vmatpush1.bf16.xpose.msra.mxu0 0
        %542 = vmatprep.subr.bf16.mxu0 0
        %543 = vmatpush1.bf16.xpose.msra.mxu0 0
        %544 = vmatprep.subr.bf16.mxu0 0
        %545 = vmatpush1.bf16.xpose.msra.mxu0 0
        %546 = vmatprep.subr.bf16.mxu0 0
        %547 = vmatpush1.bf16.xpose.msra.mxu0 0
        %548 = vmatprep.subr.bf16.mxu0 0
        %549 = vmatpush1.bf16.xpose.msra.mxu0 0
        %550 = vmatprep.mubr.bf16.mxu0 0
        %551 = vmatmul.mubr.bf16.gmra.mrb[0].mxu0 %v513
        %v552 = vpop.f32.mrb[0].mxu0
        %v553 = vadd.f32 %v509, %v552
        %v554 = vpop.f32.mrb[0].mxu0
        %v555 = vpop.f32.mrb[0].mxu0
        %v556 = vpop.f32.mrb[0].mxu0
        %557 = vdwg.mxu0
        %v558 = vsel %vm511, %v553, -inf
        %559 = vmax.xlane.f32.xlu0 %v558
        %v560 = vpop.xlane.xlu0 %559
        %v561 = vsub.f32 %v553, %v560
        %v562 = vmul.f32 %v561, 1.442695
        %v563 = vpow.pop %v562
        %v564 = vsel %vm511, %v563, 0.0
        %565 = vadd.xlane.f32.xlu0 %v564
        %v566 = vpop.xlane.xlu0 %565
        %v567 = vrcp.pop %v566
        %v568 = vmul.f32 %v563, %v567
        %v569 = vpack.c.bf16 %v568, %v568
        %v571 = vsel %vm511, %v569, 0
        %vm573 = vcmask 1043456
        %v575 = vsel %vm573, %v501, 0
        %577 = vmatprep.subr.bf16.mxu0 0
        %578 = vmatpush1.bf16.msra.mxu0 %v575
        %579 = vmatprep.subr.bf16.mxu0 0
        %580 = vmatpush1.bf16.msra.mxu0 0
        %581 = vmatprep.subr.bf16.mxu0 0
        %582 = vmatpush1.bf16.msra.mxu0 0
        %583 = vmatprep.subr.bf16.mxu0 0
        %584 = vmatpush1.bf16.msra.mxu0 0
        %585 = vmatprep.subr.bf16.mxu0 0
        %586 = vmatpush1.bf16.msra.mxu0 0
        %587 = vmatprep.subr.bf16.mxu0 0
        %588 = vmatpush1.bf16.msra.mxu0 0
        %589 = vmatprep.subr.bf16.mxu0 0
        %590 = vmatpush1.bf16.msra.mxu0 0
        %591 = vmatprep.subr.bf16.mxu0 0
        %592 = vmatpush1.bf16.msra.mxu0 0
        %593 = vmatprep.subr.bf16.mxu0 0
        %594 = vmatpush1.bf16.msra.mxu0 0
        %595 = vmatprep.subr.bf16.mxu0 0
        %596 = vmatpush1.bf16.msra.mxu0 0
        %597 = vmatprep.subr.bf16.mxu0 0
        %598 = vmatpush1.bf16.msra.mxu0 0
        %599 = vmatprep.subr.bf16.mxu0 0
        %600 = vmatpush1.bf16.msra.mxu0 0
        %601 = vmatprep.subr.bf16.mxu0 0
        %602 = vmatpush1.bf16.msra.mxu0 0
        %603 = vmatprep.subr.bf16.mxu0 0
        %604 = vmatpush1.bf16.msra.mxu0 0
        %605 = vmatprep.subr.bf16.mxu0 0
        %606 = vmatpush1.bf16.msra.mxu0 0
        %607 = vmatprep.subr.bf16.mxu0 0
        %608 = vmatpush1.bf16.msra.mxu0 0
        %609 = vmatprep.mubr.bf16.mxu0 0
        %610 = vmatmul.mubr.bf16.gmra.mrb[0].mxu0 %v571
        %v611 = vpop.f32.mrb[0].mxu0
        %v612 = vadd.f32 0.0, %v611
        %v613 = vpop.f32.mrb[0].mxu0
        %v614 = vpop.f32.mrb[0].mxu0
        %v615 = vpop.f32.mrb[0].mxu0
        %616 = vdwg.mxu0
        %v617 = vpack.c.bf16 %v612, %v612
        %vm618 = vcmask 60416
        %619 = vst.msk [vmem:[#allocation2] sm:$0xf] %vm618, %v617
        %621 = vrot.lane.b32.xlu0 %v499, 120
        %v622 = vpop.permute.xlu0 %621
        %624 = vrot.lane.b32.xlu0 %v500, 120
        %v625 = vpop.permute.xlu0 %624
        %v627 = vsel %vm511, %v622, 0
        %v630 = vsel %vm511, %v625, 0
        %632 = vmatprep.subr.bf16.mxu0 0
        %633 = vmatpush1.bf16.xpose.msra.mxu0 %v630
        %634 = vmatprep.subr.bf16.mxu0 0
        %635 = vmatpush1.bf16.xpose.msra.mxu0 0
        %636 = vmatprep.subr.bf16.mxu0 0
        %637 = vmatpush1.bf16.xpose.msra.mxu0 0
        %638 = vmatprep.subr.bf16.mxu0 0
        %639 = vmatpush1.bf16.xpose.msra.mxu0 0
        %640 = vmatprep.subr.bf16.mxu0 0
        %641 = vmatpush1.bf16.xpose.msra.mxu0 0
        %642 = vmatprep.subr.bf16.mxu0 0
        %643 = vmatpush1.bf16.xpose.msra.mxu0 0
        %644 = vmatprep.subr.bf16.mxu0 0
        %645 = vmatpush1.bf16.xpose.msra.mxu0 0
        %646 = vmatprep.subr.bf16.mxu0 0
        %647 = vmatpush1.bf16.xpose.msra.mxu0 0
        %648 = vmatprep.subr.bf16.mxu0 0
        %649 = vmatpush1.bf16.xpose.msra.mxu0 0
        %650 = vmatprep.subr.bf16.mxu0 0
        %651 = vmatpush1.bf16.xpose.msra.mxu0 0
        %652 = vmatprep.subr.bf16.mxu0 0
        %653 = vmatpush1.bf16.xpose.msra.mxu0 0
        %654 = vmatprep.subr.bf16.mxu0 0
        %655 = vmatpush1.bf16.xpose.msra.mxu0 0
        %656 = vmatprep.subr.bf16.mxu0 0
        %657 = vmatpush1.bf16.xpose.msra.mxu0 0
        %658 = vmatprep.subr.bf16.mxu0 0
        %659 = vmatpush1.bf16.xpose.msra.mxu0 0
        %660 = vmatprep.subr.bf16.mxu0 0
        %661 = vmatpush1.bf16.xpose.msra.mxu0 0
        %662 = vmatprep.subr.bf16.mxu0 0
        %663 = vmatpush1.bf16.xpose.msra.mxu0 0
        %664 = vmatprep.mubr.bf16.mxu0 0
        %665 = vmatmul.mubr.bf16.gmra.mrb[0].mxu0 %v627
        %v666 = vpop.f32.mrb[0].mxu0
        %v667 = vadd.f32 %v509, %v666
        %v668 = vpop.f32.mrb[0].mxu0
        %v669 = vpop.f32.mrb[0].mxu0
        %v670 = vpop.f32.mrb[0].mxu0
        %671 = vdwg.mxu0
        %v672 = vsel %vm511, %v667, -inf
        %673 = vmax.xlane.f32.xlu0 %v672
        %v674 = vpop.xlane.xlu0 %673
        %v675 = vsub.f32 %v667, %v674
        %v676 = vmul.f32 %v675, 1.442695
        %v677 = vpow.pop %v676
        %v678 = vsel %vm511, %v677, 0.0
        %679 = vadd.xlane.f32.xlu0 %v678
        %v680 = vpop.xlane.xlu0 %679
        %v681 = vrcp.pop %v680
        %v682 = vmul.f32 %v677, %v681
        %v683 = vpack.c.bf16 %v682, %v682
        %685 = vrot.lane.b32.xlu0 %v501, 120
        %v686 = vpop.permute.xlu0 %685
        %v688 = vsel %vm511, %v683, 0
        %v691 = vsel %vm573, %v686, 0
        %693 = vmatprep.subr.bf16.mxu0 0
        %694 = vmatpush1.bf16.msra.mxu0 %v691
        %695 = vmatprep.subr.bf16.mxu0 0
        %696 = vmatpush1.bf16.msra.mxu0 0
        %697 = vmatprep.subr.bf16.mxu0 0
        %698 = vmatpush1.bf16.msra.mxu0 0
        %699 = vmatprep.subr.bf16.mxu0 0
        %700 = vmatpush1.bf16.msra.mxu0 0
        %701 = vmatprep.subr.bf16.mxu0 0
        %702 = vmatpush1.bf16.msra.mxu0 0
        %703 = vmatprep.subr.bf16.mxu0 0
        %704 = vmatpush1.bf16.msra.mxu0 0
        %705 = vmatprep.subr.bf16.mxu0 0
        %706 = vmatpush1.bf16.msra.mxu0 0
        %707 = vmatprep.subr.bf16.mxu0 0
        %708 = vmatpush1.bf16.msra.mxu0 0
        %709 = vmatprep.subr.bf16.mxu0 0
        %710 = vmatpush1.bf16.msra.mxu0 0
        %711 = vmatprep.subr.bf16.mxu0 0
        %712 = vmatpush1.bf16.msra.mxu0 0
        %713 = vmatprep.subr.bf16.mxu0 0
        %714 = vmatpush1.bf16.msra.mxu0 0
        %715 = vmatprep.subr.bf16.mxu0 0
        %716 = vmatpush1.bf16.msra.mxu0 0
        %717 = vmatprep.subr.bf16.mxu0 0
        %718 = vmatpush1.bf16.msra.mxu0 0
        %719 = vmatprep.subr.bf16.mxu0 0
        %720 = vmatpush1.bf16.msra.mxu0 0
        %721 = vmatprep.subr.bf16.mxu0 0
        %722 = vmatpush1.bf16.msra.mxu0 0
        %723 = vmatprep.subr.bf16.mxu0 0
        %724 = vmatpush1.bf16.msra.mxu0 0
        %725 = vmatprep.mubr.bf16.mxu0 0
        %726 = vmatmul.mubr.bf16.gmra.mrb[0].mxu0 %v688
        %v727 = vpop.f32.mrb[0].mxu0
        %v728 = vadd.f32 0.0, %v727
        %v729 = vpop.f32.mrb[0].mxu0
        %v730 = vpop.f32.mrb[0].mxu0
        %v731 = vpop.f32.mrb[0].mxu0
        %732 = vdwg.mxu0
        %v733 = vpack.c.bf16 %v728, %v728
        %v735 = vunpack.c.l.b16 %v733
        %v736 = vpack.c.b16 %v735, %v735
        %737 = vrot.lane.b32.xlu0 %v736, 8
        %v738 = vpop.permute.xlu0 %737
        %vm740 = vcmask 126016
        %741 = vst.msk [vmem:[#allocation2] sm:$0xf] %vm740, %v738
        %742 = vrot.lane.b32.xlu0 %v499, 112
        %v743 = vpop.permute.xlu0 %742
        %744 = vrot.lane.b32.xlu0 %v500, 112
        %v745 = vpop.permute.xlu0 %744
        %v747 = vsel %vm511, %v743, 0
        %v750 = vsel %vm511, %v745, 0
        %752 = vmatprep.subr.bf16.mxu0 0
        %753 = vmatpush1.bf16.xpose.msra.mxu0 %v750
        %754 = vmatprep.subr.bf16.mxu0 0
        %755 = vmatpush1.bf16.xpose.msra.mxu0 0
        %756 = vmatprep.subr.bf16.mxu0 0
        %757 = vmatpush1.bf16.xpose.msra.mxu0 0
        %758 = vmatprep.subr.bf16.mxu0 0
        %759 = vmatpush1.bf16.xpose.msra.mxu0 0
        %760 = vmatprep.subr.bf16.mxu0 0
        %761 = vmatpush1.bf16.xpose.msra.mxu0 0
        %762 = vmatprep.subr.bf16.mxu0 0
        %763 = vmatpush1.bf16.xpose.msra.mxu0 0
        %764 = vmatprep.subr.bf16.mxu0 0
        %765 = vmatpush1.bf16.xpose.msra.mxu0 0
        %766 = vmatprep.subr.bf16.mxu0 0
        %767 = vmatpush1.bf16.xpose.msra.mxu0 0
        %768 = vmatprep.subr.bf16.mxu0 0
        %769 = vmatpush1.bf16.xpose.msra.mxu0 0
        %770 = vmatprep.subr.bf16.mxu0 0
        %771 = vmatpush1.bf16.xpose.msra.mxu0 0
        %772 = vmatprep.subr.bf16.mxu0 0
        %773 = vmatpush1.bf16.xpose.msra.mxu0 0
        %774 = vmatprep.subr.bf16.mxu0 0
        %775 = vmatpush1.bf16.xpose.msra.mxu0 0
        %776 = vmatprep.subr.bf16.mxu0 0
        %777 = vmatpush1.bf16.xpose.msra.mxu0 0
        %778 = vmatprep.subr.bf16.mxu0 0
        %779 = vmatpush1.bf16.xpose.msra.mxu0 0
        %780 = vmatprep.subr.bf16.mxu0 0
        %781 = vmatpush1.bf16.xpose.msra.mxu0 0
        %782 = vmatprep.subr.bf16.mxu0 0
        %783 = vmatpush1.bf16.xpose.msra.mxu0 0
        %784 = vmatprep.mubr.bf16.mxu0 0
        %785 = vmatmul.mubr.bf16.gmra.mrb[0].mxu0 %v747
        %v786 = vpop.f32.mrb[0].mxu0
        %v787 = vadd.f32 %v509, %v786
        %v788 = vpop.f32.mrb[0].mxu0
        %v789 = vpop.f32.mrb[0].mxu0
        %v790 = vpop.f32.mrb[0].mxu0
        %791 = vdwg.mxu0
        %v792 = vsel %vm511, %v787, -inf
        %793 = vmax.xlane.f32.xlu0 %v792
        %v794 = vpop.xlane.xlu0 %793
        %v795 = vsub.f32 %v787, %v794
        %v796 = vmul.f32 %v795, 1.442695
        %v797 = vpow.pop %v796
        %v798 = vsel %vm511, %v797, 0.0
        %799 = vadd.xlane.f32.xlu0 %v798
        %v800 = vpop.xlane.xlu0 %799
        %v801 = vrcp.pop %v800
        %v802 = vmul.f32 %v797, %v801
        %v803 = vpack.c.bf16 %v802, %v802
        %804 = vrot.lane.b32.xlu0 %v501, 112
        %v805 = vpop.permute.xlu0 %804
        %v807 = vsel %vm511, %v803, 0
        %v810 = vsel %vm573, %v805, 0
        %812 = vmatprep.subr.bf16.mxu0 0
        %813 = vmatpush1.bf16.msra.mxu0 %v810
        %814 = vmatprep.subr.bf16.mxu0 0
        %815 = vmatpush1.bf16.msra.mxu0 0
        %816 = vmatprep.subr.bf16.mxu0 0
        %817 = vmatpush1.bf16.msra.mxu0 0
        %818 = vmatprep.subr.bf16.mxu0 0
        %819 = vmatpush1.bf16.msra.mxu0 0
        %820 = vmatprep.subr.bf16.mxu0 0
        %821 = vmatpush1.bf16.msra.mxu0 0
        %822 = vmatprep.subr.bf16.mxu0 0
        %823 = vmatpush1.bf16.msra.mxu0 0
        %824 = vmatprep.subr.bf16.mxu0 0
        %825 = vmatpush1.bf16.msra.mxu0 0
        %826 = vmatprep.subr.bf16.mxu0 0
        %827 = vmatpush1.bf16.msra.mxu0 0
        %828 = vmatprep.subr.bf16.mxu0 0
        %829 = vmatpush1.bf16.msra.mxu0 0
        %830 = vmatprep.subr.bf16.mxu0 0
        %831 = vmatpush1.bf16.msra.mxu0 0
        %832 = vmatprep.subr.bf16.mxu0 0
        %833 = vmatpush1.bf16.msra.mxu0 0
        %834 = vmatprep.subr.bf16.mxu0 0
        %835 = vmatpush1.bf16.msra.mxu0 0
        %836 = vmatprep.subr.bf16.mxu0 0
        %837 = vmatpush1.bf16.msra.mxu0 0
        %838 = vmatprep.subr.bf16.mxu0 0
        %839 = vmatpush1.bf16.msra.mxu0 0
        %840 = vmatprep.subr.bf16.mxu0 0
        %841 = vmatpush1.bf16.msra.mxu0 0
        %842 = vmatprep.subr.bf16.mxu0 0
        %843 = vmatpush1.bf16.msra.mxu0 0
        %844 = vmatprep.mubr.bf16.mxu0 0
        %845 = vmatmul.mubr.bf16.gmra.mrb[0].mxu0 %v807
        %v846 = vpop.f32.mrb[0].mxu0
        %v847 = vadd.f32 0.0, %v846
        %v848 = vpop.f32.mrb[0].mxu0
        %v849 = vpop.f32.mrb[0].mxu0
        %v850 = vpop.f32.mrb[0].mxu0
        %851 = vdwg.mxu0
        %v852 = vpack.c.bf16 %v847, %v847
        %v854 = vunpack.c.l.b16 %v852
        %v855 = vpack.c.b16 %v854, %v854
        %856 = vrot.lane.b32.xlu0 %v855, 16
        %v857 = vpop.permute.xlu0 %856
        %vm859 = vcmask 191616
        %860 = vst.msk [vmem:[#allocation2] sm:$0xf] %vm859, %v857
        %861 = vrot.lane.b32.xlu0 %v499, 104
        %v862 = vpop.permute.xlu0 %861
        %863 = vrot.lane.b32.xlu0 %v500, 104
        %v864 = vpop.permute.xlu0 %863
        %v866 = vsel %vm511, %v862, 0
        %v869 = vsel %vm511, %v864, 0
        %871 = vmatprep.subr.bf16.mxu0 0
        %872 = vmatpush1.bf16.xpose.msra.mxu0 %v869
        %873 = vmatprep.subr.bf16.mxu0 0
        %874 = vmatpush1.bf16.xpose.msra.mxu0 0
        %875 = vmatprep.subr.bf16.mxu0 0
        %876 = vmatpush1.bf16.xpose.msra.mxu0 0
        %877 = vmatprep.subr.bf16.mxu0 0
        %878 = vmatpush1.bf16.xpose.msra.mxu0 0
        %879 = vmatprep.subr.bf16.mxu0 0
        %880 = vmatpush1.bf16.xpose.msra.mxu0 0
        %881 = vmatprep.subr.bf16.mxu0 0
        %882 = vmatpush1.bf16.xpose.msra.mxu0 0
        %883 = vmatprep.subr.bf16.mxu0 0
        %884 = vmatpush1.bf16.xpose.msra.mxu0 0
        %885 = vmatprep.subr.bf16.mxu0 0
        %886 = vmatpush1.bf16.xpose.msra.mxu0 0
        %887 = vmatprep.subr.bf16.mxu0 0
        %888 = vmatpush1.bf16.xpose.msra.mxu0 0
        %889 = vmatprep.subr.bf16.mxu0 0
        %890 = vmatpush1.bf16.xpose.msra.mxu0 0
        %891 = vmatprep.subr.bf16.mxu0 0
        %892 = vmatpush1.bf16.xpose.msra.mxu0 0
        %893 = vmatprep.subr.bf16.mxu0 0
        %894 = vmatpush1.bf16.xpose.msra.mxu0 0
        %895 = vmatprep.subr.bf16.mxu0 0
        %896 = vmatpush1.bf16.xpose.msra.mxu0 0
        %897 = vmatprep.subr.bf16.mxu0 0
        %898 = vmatpush1.bf16.xpose.msra.mxu0 0
        %899 = vmatprep.subr.bf16.mxu0 0
        %900 = vmatpush1.bf16.xpose.msra.mxu0 0
        %901 = vmatprep.subr.bf16.mxu0 0
        %902 = vmatpush1.bf16.xpose.msra.mxu0 0
        %903 = vmatprep.mubr.bf16.mxu0 0
        %904 = vmatmul.mubr.bf16.gmra.mrb[0].mxu0 %v866
        %v905 = vpop.f32.mrb[0].mxu0
        %v906 = vadd.f32 %v509, %v905
        %v907 = vpop.f32.mrb[0].mxu0
        %v908 = vpop.f32.mrb[0].mxu0
        %v909 = vpop.f32.mrb[0].mxu0
        %910 = vdwg.mxu0
        %v911 = vsel %vm511, %v906, -inf
        %912 = vmax.xlane.f32.xlu0 %v911
        %v913 = vpop.xlane.xlu0 %912
        %v914 = vsub.f32 %v906, %v913
        %v915 = vmul.f32 %v914, 1.442695
        %v916 = vpow.pop %v915
        %v917 = vsel %vm511, %v916, 0.0
        %918 = vadd.xlane.f32.xlu0 %v917
        %v919 = vpop.xlane.xlu0 %918
        %v920 = vrcp.pop %v919
        %v921 = vmul.f32 %v916, %v920
        %v922 = vpack.c.bf16 %v921, %v921
        %923 = vrot.lane.b32.xlu0 %v501, 104
        %v924 = vpop.permute.xlu0 %923
        %v926 = vsel %vm511, %v922, 0
        %v929 = vsel %vm573, %v924, 0
        %931 = vmatprep.subr.bf16.mxu0 0
        %932 = vmatpush1.bf16.msra.mxu0 %v929
        %933 = vmatprep.subr.bf16.mxu0 0
        %934 = vmatpush1.bf16.msra.mxu0 0
        %935 = vmatprep.subr.bf16.mxu0 0
        %936 = vmatpush1.bf16.msra.mxu0 0
        %937 = vmatprep.subr.bf16.mxu0 0
        %938 = vmatpush1.bf16.msra.mxu0 0
        %939 = vmatprep.subr.bf16.mxu0 0
        %940 = vmatpush1.bf16.msra.mxu0 0
        %941 = vmatprep.subr.bf16.mxu0 0
        %942 = vmatpush1.bf16.msra.mxu0 0
        %943 = vmatprep.subr.bf16.mxu0 0
        %944 = vmatpush1.bf16.msra.mxu0 0
        %945 = vmatprep.subr.bf16.mxu0 0
        %946 = vmatpush1.bf16.msra.mxu0 0
        %947 = vmatprep.subr.bf16.mxu0 0
        %948 = vmatpush1.bf16.msra.mxu0 0
        %949 = vmatprep.subr.bf16.mxu0 0
        %950 = vmatpush1.bf16.msra.mxu0 0
        %951 = vmatprep.subr.bf16.mxu0 0
        %952 = vmatpush1.bf16.msra.mxu0 0
        %953 = vmatprep.subr.bf16.mxu0 0
        %954 = vmatpush1.bf16.msra.mxu0 0
        %955 = vmatprep.subr.bf16.mxu0 0
        %956 = vmatpush1.bf16.msra.mxu0 0
        %957 = vmatprep.subr.bf16.mxu0 0
        %958 = vmatpush1.bf16.msra.mxu0 0
        %959 = vmatprep.subr.bf16.mxu0 0
        %960 = vmatpush1.bf16.msra.mxu0 0
        %961 = vmatprep.subr.bf16.mxu0 0
        %962 = vmatpush1.bf16.msra.mxu0 0
        %963 = vmatprep.mubr.bf16.mxu0 0
        %964 = vmatmul.mubr.bf16.gmra.mrb[0].mxu0 %v926
        %v965 = vpop.f32.mrb[0].mxu0
        %v966 = vadd.f32 0.0, %v965
        %v967 = vpop.f32.mrb[0].mxu0
        %v968 = vpop.f32.mrb[0].mxu0
        %v969 = vpop.f32.mrb[0].mxu0
        %970 = vdwg.mxu0
        %v971 = vpack.c.bf16 %v966, %v966
        %v973 = vunpack.c.l.b16 %v971
        %v974 = vpack.c.b16 %v973, %v973
        %975 = vrot.lane.b32.xlu0 %v974, 24
        %v976 = vpop.permute.xlu0 %975
        %vm978 = vcmask 257216
        %979 = vst.msk [vmem:[#allocation2] sm:$0xf] %vm978, %v976
        %v980 = vld [vmem:[#allocation2] sm:$0xf]
        %v981 = vld [vmem:[%s5] sm:$0xf]
        %v982 = vld [vmem:[%s5 + $0x4] sm:$0xf]
        %v983 = vld [vmem:[%s5 + $0x8] sm:$0xf]
        %v984 = vld [vmem:[%s5 + $0xc] sm:$0xf]
        %v989 = vunpack.c.l.b16 %v981
        %v990 = vunpack.c.l.b16 %v982
        %v991 = vunpack.c.l.b16 %v983
        %v992 = vunpack.c.l.b16 %v984
        %v993 = vpack.c.b16 %v990, %v989
        %v994 = vpack.c.b16 %v992, %v991
        %v998 = vsel %vm343, %v980, 0
        %1000 = vmatprep.subr.bf16.mxu0 0
        %1001 = vmatpush1.bf16.msra.mxu0 %v993
        %1002 = vmatprep.subr.bf16.mxu0 0
        %1003 = vmatpush1.bf16.msra.mxu0 %v994
        %1004 = vmatprep.subr.bf16.mxu0 0
        %1005 = vmatpush1.bf16.msra.mxu0 0
        %1006 = vmatprep.subr.bf16.mxu0 0
        %1007 = vmatpush1.bf16.msra.mxu0 0
        %1008 = vmatprep.subr.bf16.mxu0 0
        %1009 = vmatpush1.bf16.msra.mxu0 0
        %1010 = vmatprep.subr.bf16.mxu0 0
        %1011 = vmatpush1.bf16.msra.mxu0 0
        %1012 = vmatprep.subr.bf16.mxu0 0
        %1013 = vmatpush1.bf16.msra.mxu0 0
        %1014 = vmatprep.subr.bf16.mxu0 0
        %1015 = vmatpush1.bf16.msra.mxu0 0
        %1016 = vmatprep.subr.bf16.mxu0 0
        %1017 = vmatpush1.bf16.msra.mxu0 0
        %1018 = vmatprep.subr.bf16.mxu0 0
        %1019 = vmatpush1.bf16.msra.mxu0 0
        %1020 = vmatprep.subr.bf16.mxu0 0
        %1021 = vmatpush1.bf16.msra.mxu0 0
        %1022 = vmatprep.subr.bf16.mxu0 0
        %1023 = vmatpush1.bf16.msra.mxu0 0
        %1024 = vmatprep.subr.bf16.mxu0 0
        %1025 = vmatpush1.bf16.msra.mxu0 0
        %1026 = vmatprep.subr.bf16.mxu0 0
        %1027 = vmatpush1.bf16.msra.mxu0 0
        %1028 = vmatprep.subr.bf16.mxu0 0
        %1029 = vmatpush1.bf16.msra.mxu0 0
        %1030 = vmatprep.subr.bf16.mxu0 0
        %1031 = vmatpush1.bf16.msra.mxu0 0
        %1032 = vmatprep.mubr.bf16.mxu0 0
        %1033 = vmatmul.mubr.bf16.gmra.mrb[0].mxu0 %v998
        %v1034 = vpop.f32.mrb[0].mxu0
        %v1035 = vadd.f32 0.0, %v1034
        %v1036 = vpop.f32.mrb[0].mxu0
        %v1037 = vpop.f32.mrb[0].mxu0
        %v1038 = vpop.f32.mrb[0].mxu0
        %1039 = vdwg.mxu0
        %1040 = vst.msk [vmem:[%s321] sm:$0xff] %vm343, %v1035
        %s1041 = sand.u32 %s169, 1
        %s1042 = scalar_lea.sflag [#allocation5], %s1041
        %s1043 = sand.u32 %s169, 1
        %s1044 = smul.addr %s1043, 8
        %s1045 = scalar_lea.vmem [#allocation11], %s1044
        // Predicated region
        $region61: #{tpu_custom_call.1} parent=43 // pred_check
          %p1046 = pneg %p179
        $region62: #{tpu_custom_call.1} parent=43 // pred_check_branch
          %1048 = sbr.rel (%p1046) target = $region64
        $region63: #{tpu_custom_call.1} parent=43 // pred_region
          %s1050 = ssub.s32 128, 128
          %1051 = vsyncadd %s1042, %s1050
          %s1052 = smul.addr %s25, 128
          %s1053 = scalar_lea.hbm %s6, %s1052
          %s1055 = sshll.u32 %s1045, 4
          %s1056 = int_to_ptr.vmem [resolvable:$true] %s1055
          %1058 = dma.vmem_to_hbm [thread:$0]  %s1056, 128, %s1053, %s1042
        $region64: #{tpu_custom_call.1} parent=43 // pred_fallthru
          _
      $region44: #{tpu_custom_call.1} parent=5 // pred_fallthru
        _
      %p1059 = scmp.le.s32.totalorder 2, %s20
      // Predicated region
      $region65: #{tpu_custom_call.1} parent=5 // pred_check
        %p1060 = pneg %p1059
      $region66: #{tpu_custom_call.1} parent=5 // pred_check_branch
        %1062 = sbr.rel (%p1060) target = $region68
      $region67: #{tpu_custom_call.1} parent=5 // pred_region
        %s1063 = ssub.s32 %s20, 2
        // Predicated region
        $region69: #{tpu_custom_call.1} parent=67 // pred_check
          %p1064 = pneg %p185
        $region70: #{tpu_custom_call.1} parent=67 // pred_check_branch
          %1066 = sbr.rel (%p1064) target = $region72
        $region71: #{tpu_custom_call.1} parent=67 // pred_region
          %s1067 = sand.u32 %s170, 1
          %s1068 = scalar_lea.sflag [#allocation5], %s1067
          %s1069 = sand.u32 %s170, 1
          %s1070 = smul.addr %s1069, 8
          %s1071 = scalar_lea.vmem [#allocation11], %s1070
          %1072 = dma.done %s1068, 128
        $region72: #{tpu_custom_call.1} parent=67 // pred_fallthru
          _
      $region68: #{tpu_custom_call.1} parent=5 // pred_fallthru
        _
    $region6: #{tpu_custom_call.1} parent=1 // loop_footer
      %s24 = sadd.s32 1, %s20
    $region7: #{tpu_custom_call.1} parent=1 // loop_footer_branch
      %19 = sbr.rel target = $region3
    $region8: #{tpu_custom_call.1} parent=1 // loop_exit
      _
    %1073 = vsyncpa [#allocation4], 1
    %s1074 = scalar_lea.sflag [#allocation4], 1
    %1075 = vsyncpa %s1074, 1
    %1076 = vsyncpa [#allocation7], 1
    %1077 = vsyncpa [#allocation10], 1
    %1078 = vsyncpa [#allocation5], 1
    %s1079 = scalar_lea.sflag [#allocation5], 1
    %1080 = vsyncpa %s1079, 1

</llo_original>
